<compile_context>
chip_gen: v5e
topology: v5e:2x2
jax: 0.10.0
libtpu: 0.0.40
codegen_flags: <defaults>
</compile_context>

<pallas_src>
import jax
import jax.numpy as jnp
from jax.experimental import pallas as pl
from jax.experimental.pallas import tpu as pltpu


def _matmul_bn_relu_kernel(p_ref, w_ref, shift_ref, o_ref):
    """One row-tile of the fused conv(im2col matmul) + BN shift + ReLU.

    p_ref:     (TM, Kcp)     im2col patches, bf16             (VMEM)
    w_ref:     (Kcp, Coutp)  BN-scale-folded conv weight, bf16 (VMEM, resident)
    shift_ref: (1, Coutp)    folded BN shift, f32             (VMEM, resident)
    o_ref:     (TM, Coutp)   output tile, lane-dense, f32     (VMEM)
    """
    acc = jnp.dot(p_ref[...], w_ref[...], preferred_element_type=jnp.float32)
    o_ref[...] = jnp.maximum(acc + shift_ref[...], 0.0).astype(o_ref.dtype)


def _round_up(x, m):
    return ((x + m - 1) // m) * m


def _vmem_capacity_bytes():
    """Physical VMEM capacity; conservative (v7x-sized) default if unknown."""
    try:
        cap = getattr(pltpu.get_tpu_info(), "vmem_capacity_bytes", None)
        if cap:
            return int(cap)
    except Exception:
        pass
    return 64 * 1024 * 1024


def _choose_row_tile(m, kcp, coutp, patch_bytes, out_bytes, w_bytes,
                     vmem_budget):
    """Largest row tile (multiple of 8) whose double-buffered footprint fits
    the VMEM budget while keeping >= 2 grid steps whenever m allows it
    (so v7x's two TensorCores both get work and the pipeline overlaps)."""
    resident = 2 * (kcp * coutp * w_bytes + coutp * 4)   # weight + shift (worst case 2 bufs)
    for tm in (2048, 1024, 512, 256, 128, 64, 32, 16, 8):
        per_tile = 2 * tm * (kcp * patch_bytes + coutp * out_bytes)
        if resident + per_tile > vmem_budget:
            continue
        if -(-m // tm) >= 2 or tm == 8:
            return tm
    return 8


def basic_block_forward(x_nchw, w_oihw, bn_gamma, bn_beta, bn_mean, bn_var,
                        eps=1e-5):
    """Equivalent of BasicBlock.forward (Conv2d no-bias -> eval BN -> ReLU)."""
    N, Cin, H, W = x_nchw.shape
    Cout, Cin_w, KH, KW = w_oihw.shape
    assert Cin == Cin_w
    assert KH == KW and KH % 2 == 1, "only odd kernel sizes ('same' padding)"
    pad = (KH - 1) // 2

    Kc = KH * KW * Cin
    Kcp = _round_up(Kc, 16)              # bf16 sublane packing for the weight
    Coutp = _round_up(Cout, 128)         # lane-dense output stores
    out_dtype = x_nchw.dtype

    # ---- wrapper glue (plain JAX): layout, im2col (bf16), BN folding ----
    x_nhwc = jnp.transpose(x_nchw, (0, 2, 3, 1)).astype(jnp.bfloat16)
    xp = jnp.pad(x_nhwc, ((0, 0), (pad, pad), (pad, pad), (0, 0)))
    taps = [xp[:, kh:kh + H, kw:kw + W, :]
            for kh in range(KH) for kw in range(KW)]
    patches = jnp.concatenate(taps, axis=-1).reshape(N * H * W, Kc)

    # Fold BatchNorm running stats: scale into the weights, keep the shift.
    inv_std = 1.0 / jnp.sqrt(bn_var.astype(jnp.float32) + eps)
    scale = bn_gamma.astype(jnp.float32) * inv_std                    # (Cout,)
    shift = bn_beta.astype(jnp.float32) - bn_mean.astype(jnp.float32) * scale

    w_hwio = jnp.transpose(w_oihw, (2, 3, 1, 0)).astype(jnp.float32)  # KH,KW,Ci,Co
    w2d = (w_hwio * scale[None, None, None, :]).reshape(Kc, Cout)
    w2d = jnp.pad(w2d, ((0, Kcp - Kc), (0, Coutp - Cout))).astype(jnp.bfloat16)
    shift2d = jnp.pad(shift.reshape(1, Cout), ((0, 0), (0, Coutp - Cout)))

    # ---- tiling: generation-aware VMEM budget, M padded to the row tile ----
    M = N * H * W
    cap = _vmem_capacity_bytes()          # 64 MiB (v7x) / 128 MiB (v5e/v6e)
    budget = int(cap * 0.7)               # ~45 MiB on v7x, ~90 MiB on v5e/v6e
    pbytes, wbytes = 2, 2                 # bf16 patches / weight
    obytes = jnp.dtype(out_dtype).itemsize
    TM = _choose_row_tile(M, Kcp, Coutp, pbytes, obytes, wbytes, budget)
    M_pad = -(-M // TM) * TM
    grid = (M_pad // TM,)

    patches = jnp.pad(patches, ((0, M_pad - M), (0, Kcp - Kc)))

    footprint = (2 * TM * (Kcp * pbytes + Coutp * obytes)
                 + 2 * (Kcp * Coutp * wbytes + Coutp * 4))
    vmem_limit = int(min(cap * 0.85, max(footprint + (4 << 20), 16 << 20)))

    def make_call(single_buffer_resident):
        def resident(shape):
            # Constant index_map => one buffer is enough; saves VMEM on v7x.
            if single_buffer_resident:
                return pl.BlockSpec(shape, lambda i: (0, 0),
                                    pipeline_mode=pl.Buffered(1))
            return pl.BlockSpec(shape, lambda i: (0, 0))

        return pl.pallas_call(
            _matmul_bn_relu_kernel,
            out_shape=jax.ShapeDtypeStruct((M_pad, Coutp), out_dtype),
            grid_spec=pltpu.PrefetchScalarGridSpec(
                num_scalar_prefetch=0,
                grid=grid,
                in_specs=[
                    pl.BlockSpec((TM, Kcp), lambda i: (i, 0)),   # patches tile
                    resident((Kcp, Coutp)),                      # folded weight
                    resident((1, Coutp)),                        # BN shift
                ],
                out_specs=pl.BlockSpec((TM, Coutp), lambda i: (i, 0)),
            ),
            compiler_params=pltpu.CompilerParams(
                dimension_semantics=("parallel",),
                vmem_limit_bytes=vmem_limit,
            ),
        )

    try:
        out_padded = make_call(True)(patches, w2d, shift2d)
    except Exception:
        # pipeline_mode / Buffered(1) not supported by this Pallas build:
        # fall back to default double-buffered resident operands.
        out_padded = make_call(False)(patches, w2d, shift2d)

    out_nhwc = out_padded[:M, :Cout].reshape(N, H, W, Cout)
    return jnp.transpose(out_nhwc, (0, 3, 1, 2))                      # NCHW


def _reference_f32(x_nchw, w_oihw, bn_gamma, bn_beta, bn_mean, bn_var,
                   eps=1e-5):
    """Pure-f32 JAX reference (lax conv + eval BN + ReLU) — module semantics."""
    pad = (w_oihw.shape[2] - 1) // 2
    conv = jax.lax.conv_general_dilated(
        x_nchw, w_oihw, window_strides=(1, 1),
        padding=[(pad, pad), (pad, pad)],
        dimension_numbers=("NCHW", "OIHW", "NCHW"))
    inv_std = 1.0 / jnp.sqrt(bn_var + eps)
    scale = (bn_gamma * inv_std).reshape(1, -1, 1, 1)
    shift = (bn_beta - bn_mean * bn_gamma * inv_std).reshape(1, -1, 1, 1)
    return jnp.maximum(conv * scale + shift, 0.0)


def _reference_bf16(x_nchw, w_oihw, bn_gamma, bn_beta, bn_mean, bn_var,
                    eps=1e-5):
    """Reference that mirrors the kernel's precision (bf16 operands with the
    BN scale folded into the weight, f32 accumulation)."""
    pad = (w_oihw.shape[2] - 1) // 2
    inv_std = 1.0 / jnp.sqrt(bn_var.astype(jnp.float32) + eps)
    scale = bn_gamma.astype(jnp.float32) * inv_std
    shift = (bn_beta.astype(jnp.float32)
             - bn_mean.astype(jnp.float32) * scale).reshape(1, -1, 1, 1)
    w_folded = (w_oihw.astype(jnp.float32)
                * scale.reshape(-1, 1, 1, 1)).astype(jnp.bfloat16)
    conv = jax.lax.conv_general_dilated(
        x_nchw.astype(jnp.bfloat16), w_folded, window_strides=(1, 1),
        padding=[(pad, pad), (pad, pad)],
        dimension_numbers=("NCHW", "OIHW", "NCHW"),
        preferred_element_type=jnp.float32)
    return jnp.maximum(conv + shift, 0.0)


if __name__ == "__main__":
    # Small shapes consistent with the module: BasicBlock(4, 8, kernel_size=3)
    N, Cin, H, W = 2, 4, 16, 16
    Cout, K = 8, 3

    key = jax.random.PRNGKey(0)
    k_x, k_w, k_g, k_b, k_m, k_v = jax.random.split(key, 6)

    x = jax.random.normal(k_x, (N, Cin, H, W), dtype=jnp.float32)

    # Conv2d weight (bias=False): kaiming-style scale, deterministic.
    fan_in = Cin * K * K
    w = jax.random.normal(k_w, (Cout, Cin, K, K), dtype=jnp.float32) * (
        1.0 / jnp.sqrt(fan_in))

    # BatchNorm2d parameters / running stats (deterministic, non-trivial).
    bn_gamma = 0.5 + jax.random.uniform(k_g, (Cout,), dtype=jnp.float32)
    bn_beta = 0.1 * jax.random.normal(k_b, (Cout,), dtype=jnp.float32)
    bn_mean = 0.1 * jax.random.normal(k_m, (Cout,), dtype=jnp.float32)
    bn_var = 0.5 + jax.random.uniform(k_v, (Cout,), dtype=jnp.float32)

    out = basic_block_forward(x, w, bn_gamma, bn_beta, bn_mean, bn_var)
    out = jax.block_until_ready(out)
    assert out.shape == (N, Cout, H, W), out.shape

    # Tight check against a reference with matching (bf16-operand, f32-acc)
    # precision, different code path (XLA conv).
    ref_b = jax.block_until_ready(
        _reference_bf16(x, w, bn_gamma, bn_beta, bn_mean, bn_var))
    assert jnp.allclose(out, ref_b, atol=5e-3, rtol=5e-3), (
        float(jnp.max(jnp.abs(out - ref_b))))

    # Loosened check against the pure-f32 module semantics (bf16 MXU operands
    # imply ~1e-2 absolute error at these magnitudes — documented tradeoff).
    ref_f = jax.block_until_ready(
        _reference_f32(x, w, bn_gamma, bn_beta, bn_mean, bn_var))
    assert jnp.allclose(out, ref_f, atol=5e-2, rtol=5e-2), (
        float(jnp.max(jnp.abs(out - ref_f))))

    print("KERNEL_OK")
</pallas_src>

<mosaic_0001>
module attributes {stable_mosaic.version = 11 : i64} {
  func.func @_matmul_bn_relu_kernel(%arg0: i32, %arg1: memref<256x48xbf16, #tpu.memory_space<vmem>>, %arg2: memref<48x128xbf16, #tpu.memory_space<vmem>>, %arg3: memref<1x128xf32, #tpu.memory_space<vmem>>, %arg4: memref<256x128xf32, #tpu.memory_space<vmem>>) attributes {dimension_semantics = [#tpu.dimension_semantics<parallel>], iteration_bounds = array<i64: 2>, scalar_prefetch = 0 : i64, scratch_operands = 0 : i64, tpu.core_type = #tpu.core_type<tc>, window_params = [{transform_indices = @transform_0, window_bounds = array<i64: 256, 48>}, {pipeline_mode = #tpu.pipeline_mode<synchronous>, transform_indices = @transform_1, window_bounds = array<i64: 48, 128>}, {pipeline_mode = #tpu.pipeline_mode<synchronous>, transform_indices = @transform_2, window_bounds = array<i64: 1, 128>}, {transform_indices = @transform_3, window_bounds = array<i64: 256, 128>}]} {
    %c0 = arith.constant 0 : index
    %c0_0 = arith.constant 0 : index
    %0 = vector.load %arg1[%c0, %c0_0] : memref<256x48xbf16, #tpu.memory_space<vmem>>, vector<256x48xbf16>
    %c0_1 = arith.constant 0 : index
    %c0_2 = arith.constant 0 : index
    %1 = vector.load %arg2[%c0_1, %c0_2] : memref<48x128xbf16, #tpu.memory_space<vmem>>, vector<48x128xbf16>
    %cst = arith.constant dense<0.000000e+00> : vector<256x128xf32>
    %2 = tpu.matmul %0, %1, %cst {dimension_numbers = #tpu.dot_dimension_numbers<[1], [0], [0], [1], [0, 0, 1, 1], [], []>} : vector<256x48xbf16>, vector<48x128xbf16>, vector<256x128xf32> -> vector<256x128xf32>
    %c0_3 = arith.constant 0 : index
    %c0_4 = arith.constant 0 : index
    %3 = vector.load %arg3[%c0_3, %c0_4] : memref<1x128xf32, #tpu.memory_space<vmem>>, vector<1x128xf32>
    %4 = vector.broadcast %3 : vector<1x128xf32> to vector<256x128xf32>
    %5 = arith.addf %2, %4 : vector<256x128xf32>
    %cst_5 = arith.constant 0.000000e+00 : f32
    %6 = vector.broadcast %cst_5 : f32 to vector<256x128xf32>
    %7 = arith.maximumf %5, %6 : vector<256x128xf32>
    %c0_6 = arith.constant 0 : index
    %c0_7 = arith.constant 0 : index
    %8 = vector.load %arg4[%c0_6, %c0_7] : memref<256x128xf32, #tpu.memory_space<vmem>>, vector<256x128xf32>
    tpu.vector_store %arg4[%c0_6, %c0_7], %7 {strides = array<i32>} : memref<256x128xf32, #tpu.memory_space<vmem>>, vector<256x128xf32>,
    return
  }
  func.func @transform_0(%arg0: i32) -> (i32, i32) {
    %c0_i32 = arith.constant 0 : i32
    %c0_i32_0 = arith.constant 0 : i32
    return %arg0, %c0_i32 : i32, i32
  }
  func.func @transform_1(%arg0: i32) -> (i32, i32) {
    %c0_i32 = arith.constant 0 : i32
    %c0_i32_0 = arith.constant 0 : i32
    %c0_i32_1 = arith.constant 0 : i32
    return %c0_i32, %c0_i32_0 : i32, i32
  }
  func.func @transform_2(%arg0: i32) -> (i32, i32) {
    %c0_i32 = arith.constant 0 : i32
    %c0_i32_0 = arith.constant 0 : i32
    %c0_i32_1 = arith.constant 0 : i32
    return %c0_i32, %c0_i32_0 : i32, i32
  }
  func.func @transform_3(%arg0: i32) -> (i32, i32) {
    %c0_i32 = arith.constant 0 : i32
    %c0_i32_0 = arith.constant 0 : i32
    return %arg0, %c0_i32 : i32, i32
  }
}

module attributes {stable_mosaic.version = 11 : i64} {
  func.func @_matmul_bn_relu_kernel(%arg0: i32, %arg1: memref<256x48xbf16, #tpu.memory_space<vmem>>, %arg2: memref<48x128xbf16, #tpu.memory_space<vmem>>, %arg3: memref<1x128xf32, #tpu.memory_space<vmem>>, %arg4: memref<256x128xf32, #tpu.memory_space<vmem>>) attributes {dimension_semantics = [#tpu.dimension_semantics<parallel>], iteration_bounds = array<i64: 2>, scalar_prefetch = 0 : i64, scratch_operands = 0 : i64, tpu.core_type = #tpu.core_type<tc>, window_params = [{transform_indices = @transform_0, window_bounds = array<i64: 256, 48>}, {pipeline_mode = #tpu.pipeline_mode<synchronous>, transform_indices = @transform_1, window_bounds = array<i64: 48, 128>}, {pipeline_mode = #tpu.pipeline_mode<synchronous>, transform_indices = @transform_2, window_bounds = array<i64: 1, 128>}, {transform_indices = @transform_3, window_bounds = array<i64: 256, 128>}]} {
    %c0 = arith.constant 0 : index
    %c0_0 = arith.constant 0 : index
    %0 = vector.load %arg1[%c0, %c0_0] : memref<256x48xbf16, #tpu.memory_space<vmem>>, vector<256x48xbf16>
    %c0_1 = arith.constant 0 : index
    %c0_2 = arith.constant 0 : index
    %1 = vector.load %arg2[%c0_1, %c0_2] : memref<48x128xbf16, #tpu.memory_space<vmem>>, vector<48x128xbf16>
    %cst = arith.constant dense<0.000000e+00> : vector<256x128xf32>
    %2 = tpu.matmul %0, %1, %cst {dimension_numbers = #tpu.dot_dimension_numbers<[1], [0], [0], [1], [0, 0, 1, 1], [], []>} : vector<256x48xbf16>, vector<48x128xbf16>, vector<256x128xf32> -> vector<256x128xf32>
    %c0_3 = arith.constant 0 : index
    %c0_4 = arith.constant 0 : index
    %3 = vector.load %arg3[%c0_3, %c0_4] : memref<1x128xf32, #tpu.memory_space<vmem>>, vector<1x128xf32>
    %4 = vector.broadcast %3 : vector<1x128xf32> to vector<256x128xf32>
    %5 = arith.addf %2, %4 : vector<256x128xf32>
    %cst_5 = arith.constant 0.000000e+00 : f32
    %6 = vector.broadcast %cst_5 : f32 to vector<256x128xf32>
    %7 = arith.maximumf %5, %6 : vector<256x128xf32>
    %c0_6 = arith.constant 0 : index
    %c0_7 = arith.constant 0 : index
    %8 = vector.load %arg4[%c0_6, %c0_7] : memref<256x128xf32, #tpu.memory_space<vmem>>, vector<256x128xf32>
    tpu.vector_store %arg4[%c0_6, %c0_7], %7 {strides = array<i32>} : memref<256x128xf32, #tpu.memory_space<vmem>>, vector<256x128xf32>,
    return
  }
  func.func @transform_0(%arg0: i32) -> (i32, i32) {
    %c0_i32 = arith.constant 0 : i32
    %c0_i32_0 = arith.constant 0 : i32
    return %arg0, %c0_i32 : i32, i32
  }
  func.func @transform_1(%arg0: i32) -> (i32, i32) {
    %c0_i32 = arith.constant 0 : i32
    %c0_i32_0 = arith.constant 0 : i32
    %c0_i32_1 = arith.constant 0 : i32
    return %c0_i32, %c0_i32_0 : i32, i32
  }
  func.func @transform_2(%arg0: i32) -> (i32, i32) {
    %c0_i32 = arith.constant 0 : i32
    %c0_i32_0 = arith.constant 0 : i32
    %c0_i32_1 = arith.constant 0 : i32
    return %c0_i32, %c0_i32_0 : i32, i32
  }
  func.func @transform_3(%arg0: i32) -> (i32, i32) {
    %c0_i32 = arith.constant 0 : i32
    %c0_i32_0 = arith.constant 0 : i32
    return %arg0, %c0_i32 : i32, i32
  }
}

</mosaic_0001>

<llo_original>
// kernel: tpu_custom_call.1
$region0: #{tpu_custom_call.1}
  #allocation0 [shape = 'u32[]', space=smem, size = 0x4, offset = 0x4, fixed_abs, tag = 'smem constant byte address 0x4 - core index']
  #allocation1 [shape = 'u32[72,128]{1,0:T(1,128)}', space=vmem, size = 0x9000, scoped, tag = 'internal scratch']
  %s0 = inlined_call_operand.vmem [shape: bf16[512,48], index: 0, kind: input, shape index: {}]
  %s1 = inlined_call_operand.vmem [shape: bf16[48,128], index: 1, kind: input, shape index: {}]
  %s2 = inlined_call_operand.vmem [shape: f32[1,128], index: 2, kind: input, shape index: {}]
  %s3 = inlined_call_operand.hbm [shape: f32[512,128], index: 3, kind: output, shape index: {}]
  %s4 = sld [smem:[#allocation0]]
  $region45: #{tpu_custom_call.1} parent=0
    _
  %s6 = ssub.s32 1, %s4
  %s7 = scalar_select 0, %s6, %s4
  $region1: #{tpu_custom_call.1} parent=0
    #allocation2 [shape = 'u8[262144]{0}', space=vmem, size = 0x40000, scoped, tag = 'output window, operand 0']
    #allocation3 [shape = 's32[2]{0}', space=sflag, size = 0x8, scoped, tag = 'scoped memory for tpu_custom_call.1']
    %8 = vsyncpa [#allocation3], 0
    %s9 = scalar_lea.sflag [#allocation3], 1
    %10 = vsyncpa %s9, 0
    loop: start=0, step=1, limit=4
    $region2: #{tpu_custom_call.1} parent=1 // loop_pre_header
      _
    $region3: #{tpu_custom_call.1} parent=1 // loop_header
      %s12 = sphi 0, %s16
      %p13 = scmp.ge.s32.totalorder %s12, 4
      %s22 = sphi 0, %s24
      %s25 = sphi 0, %s22
      %s26 = sphi 0, %s25
      %s42 = sphi 0, %s26
      %s46 = sphi 0, %s46
      %s48 = sphi 0, %s46
      %s49 = sphi 0, %s48
      %s63 = sphi 0, %s49
      %s67 = sphi 0, %s67
      %s69 = sphi 0, %s67
      %s70 = sphi 0, %s69
      %s84 = sphi 0, %s70
      %s90 = sphi 0, %s92
      %s93 = sphi 0, %s90
      %s94 = sphi 0, %s93
      %s110 = sphi 0, %s94
    $region4: #{tpu_custom_call.1} parent=1 // loop_header_branch
      %15 = sbr.rel (%p13) target = $region8
    $region5: #{tpu_custom_call.1} parent=1 // loop_body
      %s17 = ssub.s32 %s12, 1
      %s18 = ssub.s32 %s12, 2
      %s19 = sadd.s32 %s12, 1
      %s20 = ssub.s32 %s12, %s19
      %p21 = scmp.eq.s32.totalorder %s20, 0
      %s23 = sadd.s32 %s22, 1
      %s24 = scalar_select %p21, %s22, %s23
      %p27 = pneg %p21
      %p28 = scmp.eq.s32.totalorder %s12, 1
      %p29 = por %p27, %p28
      %p30 = scmp.ne.s32.totalorder %s22, %s25
      %p31 = scmp.eq.s32.totalorder %s12, 0
      %p32 = por %p30, %p31
      %p33 = scmp.ne.s32.totalorder %s22, %s25
      %p34 = scmp.eq.s32.totalorder %s17, 1
      %p35 = por %p33, %p34
      %p36 = scmp.ne.s32.totalorder %s25, %s26
      %p37 = scmp.eq.s32.totalorder %s17, 0
      %p38 = por %p36, %p37
      %p39 = scmp.ne.s32.totalorder %s25, %s26
      %p40 = scmp.eq.s32.totalorder %s18, 1
      %p41 = por %p39, %p40
      %p43 = scmp.ne.s32.totalorder %s26, %s42
      %p44 = scmp.eq.s32.totalorder %s18, 0
      %p45 = por %p43, %p44
      %s47 = sadd.s32 %s46, 1
      %p50 = scmp.eq.s32.totalorder %s12, 1
      %p51 = scmp.ne.s32.totalorder %s46, %s48
      %p52 = scmp.eq.s32.totalorder %s12, 0
      %p53 = por %p51, %p52
      %p54 = scmp.ne.s32.totalorder %s46, %s48
      %p55 = scmp.eq.s32.totalorder %s17, 1
      %p56 = por %p54, %p55
      %p57 = scmp.ne.s32.totalorder %s48, %s49
      %p58 = scmp.eq.s32.totalorder %s17, 0
      %p59 = por %p57, %p58
      %p60 = scmp.ne.s32.totalorder %s48, %s49
      %p61 = scmp.eq.s32.totalorder %s18, 1
      %p62 = por %p60, %p61
      %p64 = scmp.ne.s32.totalorder %s49, %s63
      %p65 = scmp.eq.s32.totalorder %s18, 0
      %p66 = por %p64, %p65
      %s68 = sadd.s32 %s67, 1
      %p71 = scmp.eq.s32.totalorder %s12, 1
      %p72 = scmp.ne.s32.totalorder %s67, %s69
      %p73 = scmp.eq.s32.totalorder %s12, 0
      %p74 = por %p72, %p73
      %p75 = scmp.ne.s32.totalorder %s67, %s69
      %p76 = scmp.eq.s32.totalorder %s17, 1
      %p77 = por %p75, %p76
      %p78 = scmp.ne.s32.totalorder %s69, %s70
      %p79 = scmp.eq.s32.totalorder %s17, 0
      %p80 = por %p78, %p79
      %p81 = scmp.ne.s32.totalorder %s69, %s70
      %p82 = scmp.eq.s32.totalorder %s18, 1
      %p83 = por %p81, %p82
      %p85 = scmp.ne.s32.totalorder %s70, %s84
      %p86 = scmp.eq.s32.totalorder %s18, 0
      %p87 = por %p85, %p86
      %s88 = ssub.s32 %s12, %s19
      %p89 = scmp.eq.s32.totalorder %s88, 0
      %s91 = sadd.s32 %s90, 1
      %s92 = scalar_select %p89, %s90, %s91
      %p95 = pneg %p89
      %p96 = scmp.eq.s32.totalorder %s12, 1
      %p97 = por %p95, %p96
      %p98 = scmp.ne.s32.totalorder %s90, %s93
      %p99 = scmp.eq.s32.totalorder %s12, 0
      %p100 = por %p98, %p99
      %p101 = scmp.ne.s32.totalorder %s90, %s93
      %p102 = scmp.eq.s32.totalorder %s17, 1
      %p103 = por %p101, %p102
      %p104 = scmp.ne.s32.totalorder %s93, %s94
      %p105 = scmp.eq.s32.totalorder %s17, 0
      %p106 = por %p104, %p105
      %p107 = scmp.ne.s32.totalorder %s93, %s94
      %p108 = scmp.eq.s32.totalorder %s18, 1
      %p109 = por %p107, %p108
      %p111 = scmp.ne.s32.totalorder %s94, %s110
      %p112 = scmp.eq.s32.totalorder %s18, 0
      %p113 = por %p111, %p112
      %p114 = scmp.le.s32.totalorder 1, %s12
      %p115 = scmp.lt.s32.totalorder %s12, 3
      %p116 = pnand %p114, %p115
      %p117 = pneg %p116
      // Predicated region
      $region9: #{tpu_custom_call.1} parent=5 // pred_check
        _
      $region10: #{tpu_custom_call.1} parent=5 // pred_check_branch
        %119 = sbr.rel (%p116) target = $region12
      $region11: #{tpu_custom_call.1} parent=5 // pred_region
        %s120 = ssub.s32 %s12, 1
        // Predicated region
        $region13: #{tpu_custom_call.1} parent=11 // pred_check
          %p121 = pneg %p59
        $region14: #{tpu_custom_call.1} parent=11 // pred_check_branch
          %123 = sbr.rel (%p121) target = $region16
        $region15: #{tpu_custom_call.1} parent=11 // pred_region
          _
        $region16: #{tpu_custom_call.1} parent=11 // pred_fallthru
          _
        // Predicated region
        $region17: #{tpu_custom_call.1} parent=11 // pred_check
          %p124 = pneg %p80
        $region18: #{tpu_custom_call.1} parent=11 // pred_check_branch
          %126 = sbr.rel (%p124) target = $region20
        $region19: #{tpu_custom_call.1} parent=11 // pred_region
          _
        $region20: #{tpu_custom_call.1} parent=11 // pred_fallthru
          _
      $region12: #{tpu_custom_call.1} parent=5 // pred_fallthru
        _
      %p127 = scmp.lt.s32.totalorder %s12, 2
      // Predicated region
      $region21: #{tpu_custom_call.1} parent=5 // pred_check
        %p128 = pneg %p127
      $region22: #{tpu_custom_call.1} parent=5 // pred_check_branch
        %130 = sbr.rel (%p128) target = $region24
      $region23: #{tpu_custom_call.1} parent=5 // pred_region
        // Predicated region
        $region25: #{tpu_custom_call.1} parent=23 // pred_check
          %p131 = pneg %p32
        $region26: #{tpu_custom_call.1} parent=23 // pred_check_branch
          %133 = sbr.rel (%p131) target = $region28
        $region27: #{tpu_custom_call.1} parent=23 // pred_region
          %s134 = smul.u32 32, %s12
          %p135 = scmp.lt.s32.totalorder %s134, 63
          %s136 = scalar_select %p135, %s134, 63
          %s137 = smul.addr %s136, 4
          %s138 = scalar_lea.vmem %s0, %s137
          %s139 = smul.u32 32, %s12
        $region28: #{tpu_custom_call.1} parent=23 // pred_fallthru
          _
      $region24: #{tpu_custom_call.1} parent=5 // pred_fallthru
        _
      %p140 = scmp.le.s32.totalorder 1, %s12
      %p141 = scmp.lt.s32.totalorder %s12, 3
      %p142 = pnand %p140, %p141
      %p143 = pneg %p142
      // Predicated region
      $region29: #{tpu_custom_call.1} parent=5 // pred_check
        _
      $region30: #{tpu_custom_call.1} parent=5 // pred_check_branch
        %145 = sbr.rel (%p142) target = $region32
      $region31: #{tpu_custom_call.1} parent=5 // pred_region
        %s146 = ssub.s32 %s12, 1
        %s147 = smul.u32 32, %s17
        %p148 = scmp.lt.s32.totalorder %s147, 63
        %s149 = scalar_select %p148, %s147, 63
        %s150 = smul.addr %s149, 4
        %s151 = scalar_lea.vmem %s0, %s150
        %p152 = pneg %p38
        %p153 = pneg %p35
        %p154 = pneg %p59
        %p155 = pneg %p56
        %p156 = pneg %p80
        %p157 = pneg %p77
        %p158 = pneg %p106
        %p159 = pneg %p103
        %s160 = sand.u32 %s93, 1
        %s161 = scalar_lea.sflag [#allocation3], %s160
        %s162 = sand.u32 %s93, 1
        %s163 = smul.addr %s162, 256
        %s164 = scalar_lea.vmem [#allocation2], %s163
        %s165 = smul.u32 32, %s17
        %p166 = scmp.lt.s32.totalorder %s165, 63
        %s167 = scalar_select %p166, %s165, 63
        %s168 = smul.addr %s167, 4
        %s169 = scalar_lea.vmem %s0, %s168
        %s170 = smul.u32 32, %s17
        %s171 = smul.u32 32, %s17
        %v173 = vld [vmem:[%s169] sm:$0xf]
        %v174 = vld [vmem:[%s169 + $0x4] sm:$0xf]
        %v175 = vld [vmem:[%s169 + $0x8] sm:$0xf]
        %v176 = vld [vmem:[%s169 + $0xc] sm:$0xf]
        %v177 = vld [vmem:[%s169 + $0x10] sm:$0xf]
        %v178 = vld [vmem:[%s169 + $0x14] sm:$0xf]
        %v179 = vld [vmem:[%s169 + $0x18] sm:$0xf]
        %v180 = vld [vmem:[%s169 + $0x1c] sm:$0xf]
        %v181 = vld [vmem:[%s169 + $0x20] sm:$0xf]
        %v182 = vld [vmem:[%s169 + $0x24] sm:$0xf]
        %v183 = vld [vmem:[%s169 + $0x28] sm:$0xf]
        %v184 = vld [vmem:[%s169 + $0x2c] sm:$0xf]
        %v185 = vld [vmem:[%s169 + $0x30] sm:$0xf]
        %v186 = vld [vmem:[%s169 + $0x34] sm:$0xf]
        %v187 = vld [vmem:[%s169 + $0x38] sm:$0xf]
        %v188 = vld [vmem:[%s169 + $0x3c] sm:$0xf]
        %v189 = vld [vmem:[%s169 + $0x40] sm:$0xf]
        %v190 = vld [vmem:[%s169 + $0x44] sm:$0xf]
        %v191 = vld [vmem:[%s169 + $0x48] sm:$0xf]
        %v192 = vld [vmem:[%s169 + $0x4c] sm:$0xf]
        %v193 = vld [vmem:[%s169 + $0x50] sm:$0xf]
        %v194 = vld [vmem:[%s169 + $0x54] sm:$0xf]
        %v195 = vld [vmem:[%s169 + $0x58] sm:$0xf]
        %v196 = vld [vmem:[%s169 + $0x5c] sm:$0xf]
        %v197 = vld [vmem:[%s169 + $0x60] sm:$0xf]
        %v198 = vld [vmem:[%s169 + $0x64] sm:$0xf]
        %v199 = vld [vmem:[%s169 + $0x68] sm:$0xf]
        %v200 = vld [vmem:[%s169 + $0x6c] sm:$0xf]
        %v201 = vld [vmem:[%s169 + $0x70] sm:$0xf]
        %v202 = vld [vmem:[%s169 + $0x74] sm:$0xf]
        %v203 = vld [vmem:[%s169 + $0x78] sm:$0xf]
        %v204 = vld [vmem:[%s169 + $0x7c] sm:$0xf]
        %v205 = vld [vmem:[%s1] sm:$0xf]
        %v206 = vld [vmem:[%s1 + $0x4] sm:$0xf]
        %v207 = vld [vmem:[%s1 + $0x8] sm:$0xf]
        %v208 = vld [vmem:[%s1 + $0xc] sm:$0xf]
        %v209 = vld [vmem:[%s1 + $0x10] sm:$0xf]
        %v210 = vld [vmem:[%s1 + $0x14] sm:$0xf]
        %v211 = vld [vmem:[%s2] sm:$0x1]
        %v213 = vperm.slane %v211, 0
        %v247 = vunpack.c.l.b16 %v173
        %v248 = vunpack.c.l.b16 %v174
        %v249 = vunpack.c.l.b16 %v175
        %v250 = vunpack.c.l.b16 %v176
        %v251 = vunpack.c.l.b16 %v177
        %v252 = vunpack.c.l.b16 %v178
        %v253 = vunpack.c.l.b16 %v179
        %v254 = vunpack.c.l.b16 %v180
        %v255 = vunpack.c.l.b16 %v181
        %v256 = vunpack.c.l.b16 %v182
        %v257 = vunpack.c.l.b16 %v183
        %v258 = vunpack.c.l.b16 %v184
        %v259 = vunpack.c.l.b16 %v185
        %v260 = vunpack.c.l.b16 %v186
        %v261 = vunpack.c.l.b16 %v187
        %v262 = vunpack.c.l.b16 %v188
        %v263 = vunpack.c.l.b16 %v189
        %v264 = vunpack.c.l.b16 %v190
        %v265 = vunpack.c.l.b16 %v191
        %v266 = vunpack.c.l.b16 %v192
        %v267 = vunpack.c.l.b16 %v193
        %v268 = vunpack.c.l.b16 %v194
        %v269 = vunpack.c.l.b16 %v195
        %v270 = vunpack.c.l.b16 %v196
        %v271 = vunpack.c.l.b16 %v197
        %v272 = vunpack.c.l.b16 %v198
        %v273 = vunpack.c.l.b16 %v199
        %v274 = vunpack.c.l.b16 %v200
        %v275 = vunpack.c.l.b16 %v201
        %v276 = vunpack.c.l.b16 %v202
        %v277 = vunpack.c.l.b16 %v203
        %v278 = vunpack.c.l.b16 %v204
        %v279 = vpack.c.b16 %v248, %v247
        %v280 = vpack.c.b16 %v250, %v249
        %v281 = vpack.c.b16 %v252, %v251
        %v282 = vpack.c.b16 %v254, %v253
        %v283 = vpack.c.b16 %v256, %v255
        %v284 = vpack.c.b16 %v258, %v257
        %v285 = vpack.c.b16 %v260, %v259
        %v286 = vpack.c.b16 %v262, %v261
        %v287 = vpack.c.b16 %v264, %v263
        %v288 = vpack.c.b16 %v266, %v265
        %v289 = vpack.c.b16 %v268, %v267
        %v290 = vpack.c.b16 %v270, %v269
        %v291 = vpack.c.b16 %v272, %v271
        %v292 = vpack.c.b16 %v274, %v273
        %v293 = vpack.c.b16 %v276, %v275
        %v294 = vpack.c.b16 %v278, %v277
        %v301 = vunpack.c.l.b16 %v205
        %v302 = vunpack.c.l.b16 %v206
        %v303 = vunpack.c.l.b16 %v207
        %v304 = vunpack.c.l.b16 %v208
        %v305 = vunpack.c.l.b16 %v209
        %v306 = vunpack.c.l.b16 %v210
        %v307 = vpack.c.b16 %v302, %v301
        %v308 = vpack.c.b16 %v304, %v303
        %v309 = vpack.c.b16 %v306, %v305
        %vm313 = vcmask 392192
        %v315 = vsel %vm313, %v279, 0
        %v318 = vsel %vm313, %v280, 0
        %v321 = vsel %vm313, %v281, 0
        %v324 = vsel %vm313, %v282, 0
        %v327 = vsel %vm313, %v283, 0
        %v330 = vsel %vm313, %v284, 0
        %v333 = vsel %vm313, %v285, 0
        %v336 = vsel %vm313, %v286, 0
        %v339 = vsel %vm313, %v287, 0
        %v342 = vsel %vm313, %v288, 0
        %v345 = vsel %vm313, %v289, 0
        %v348 = vsel %vm313, %v290, 0
        %v351 = vsel %vm313, %v291, 0
        %v354 = vsel %vm313, %v292, 0
        %v357 = vsel %vm313, %v293, 0
        %v360 = vsel %vm313, %v294, 0
        %362 = vmatpush.bf16.msra.mxu0 0
        %363 = vmatpush.bf16.msra.mxu0 0
        %364 = vmatpush.bf16.msra.mxu0 0
        %365 = vmatpush.bf16.msra.mxu0 0
        %366 = vmatpush.bf16.msra.mxu0 0
        %367 = vmatpush.bf16.msra.mxu0 %v309
        %368 = vmatpush.bf16.msra.mxu0 %v308
        %369 = vmatpush.bf16.msra.mxu0 %v307
        %370 = vmatmul.bf16.gmra.mxu0 %v315
        %v371 = vpop.f32.mrf.mxu0
        %v372 = vadd.f32 %v213, %v371
        %v373 = vpop.f32.mrf.mxu0
        %v374 = vadd.f32 %v213, %v373
        %375 = vmatmul.bf16.gmra.mxu0 %v318
        %v376 = vpop.f32.mrf.mxu0
        %v377 = vadd.f32 %v213, %v376
        %v378 = vpop.f32.mrf.mxu0
        %v379 = vadd.f32 %v213, %v378
        %380 = vmatmul.bf16.gmra.mxu0 %v321
        %v381 = vpop.f32.mrf.mxu0
        %v382 = vadd.f32 %v213, %v381
        %v383 = vpop.f32.mrf.mxu0
        %v384 = vadd.f32 %v213, %v383
        %385 = vmatmul.bf16.gmra.mxu0 %v324
        %v386 = vpop.f32.mrf.mxu0
        %v387 = vadd.f32 %v213, %v386
        %v388 = vpop.f32.mrf.mxu0
        %v389 = vadd.f32 %v213, %v388
        %390 = vmatmul.bf16.gmra.mxu0 %v327
        %v391 = vpop.f32.mrf.mxu0
        %v392 = vadd.f32 %v213, %v391
        %v393 = vpop.f32.mrf.mxu0
        %v394 = vadd.f32 %v213, %v393
        %395 = vmatmul.bf16.gmra.mxu0 %v330
        %v396 = vpop.f32.mrf.mxu0
        %v397 = vadd.f32 %v213, %v396
        %v398 = vpop.f32.mrf.mxu0
        %v399 = vadd.f32 %v213, %v398
        %400 = vmatmul.bf16.gmra.mxu0 %v333
        %v401 = vpop.f32.mrf.mxu0
        %v402 = vadd.f32 %v213, %v401
        %v403 = vpop.f32.mrf.mxu0
        %v404 = vadd.f32 %v213, %v403
        %405 = vmatmul.bf16.gmra.mxu0 %v336
        %v406 = vpop.f32.mrf.mxu0
        %v407 = vadd.f32 %v213, %v406
        %v408 = vpop.f32.mrf.mxu0
        %v409 = vadd.f32 %v213, %v408
        %410 = vmatmul.bf16.gmra.mxu0 %v339
        %v411 = vpop.f32.mrf.mxu0
        %v412 = vadd.f32 %v213, %v411
        %v413 = vpop.f32.mrf.mxu0
        %v414 = vadd.f32 %v213, %v413
        %415 = vmatmul.bf16.gmra.mxu0 %v342
        %v416 = vpop.f32.mrf.mxu0
        %v417 = vadd.f32 %v213, %v416
        %v418 = vpop.f32.mrf.mxu0
        %v419 = vadd.f32 %v213, %v418
        %420 = vmatmul.bf16.gmra.mxu0 %v345
        %v421 = vpop.f32.mrf.mxu0
        %v422 = vadd.f32 %v213, %v421
        %v423 = vpop.f32.mrf.mxu0
        %v424 = vadd.f32 %v213, %v423
        %425 = vmatmul.bf16.gmra.mxu0 %v348
        %v426 = vpop.f32.mrf.mxu0
        %v427 = vadd.f32 %v213, %v426
        %v428 = vpop.f32.mrf.mxu0
        %v429 = vadd.f32 %v213, %v428
        %430 = vmatmul.bf16.gmra.mxu0 %v351
        %v431 = vpop.f32.mrf.mxu0
        %v432 = vadd.f32 %v213, %v431
        %v433 = vpop.f32.mrf.mxu0
        %v434 = vadd.f32 %v213, %v433
        %435 = vmatmul.bf16.gmra.mxu0 %v354
        %v436 = vpop.f32.mrf.mxu0
        %v437 = vadd.f32 %v213, %v436
        %v438 = vpop.f32.mrf.mxu0
        %v439 = vadd.f32 %v213, %v438
        %440 = vmatmul.bf16.gmra.mxu0 %v357
        %v441 = vpop.f32.mrf.mxu0
        %v442 = vadd.f32 %v213, %v441
        %v443 = vpop.f32.mrf.mxu0
        %v444 = vadd.f32 %v213, %v443
        %445 = vmatmul.bf16.gmra.mxu0 %v360
        %v446 = vpop.f32.mrf.mxu0
        %v447 = vadd.f32 %v213, %v446
        %v448 = vpop.f32.mrf.mxu0
        %v449 = vadd.f32 %v213, %v448
        %450 = vdwg.mxu0
        %v451 = vmax.f32 %v372, 0.0
        %v452 = vmax.f32 %v374, 0.0
        %v453 = vmax.f32 %v377, 0.0
        %v454 = vmax.f32 %v379, 0.0
        %v455 = vmax.f32 %v382, 0.0
        %v456 = vmax.f32 %v384, 0.0
        %v457 = vmax.f32 %v387, 0.0
        %v458 = vmax.f32 %v389, 0.0
        %v459 = vmax.f32 %v392, 0.0
        %v460 = vmax.f32 %v394, 0.0
        %v461 = vmax.f32 %v397, 0.0
        %v462 = vmax.f32 %v399, 0.0
        %v463 = vmax.f32 %v402, 0.0
        %v464 = vmax.f32 %v404, 0.0
        %v465 = vmax.f32 %v407, 0.0
        %v466 = vmax.f32 %v409, 0.0
        %v467 = vmax.f32 %v412, 0.0
        %v468 = vmax.f32 %v414, 0.0
        %v469 = vmax.f32 %v417, 0.0
        %v470 = vmax.f32 %v419, 0.0
        %v471 = vmax.f32 %v422, 0.0
        %v472 = vmax.f32 %v424, 0.0
        %v473 = vmax.f32 %v427, 0.0
        %v474 = vmax.f32 %v429, 0.0
        %v475 = vmax.f32 %v432, 0.0
        %v476 = vmax.f32 %v434, 0.0
        %v477 = vmax.f32 %v437, 0.0
        %v478 = vmax.f32 %v439, 0.0
        %v479 = vmax.f32 %v442, 0.0
        %v480 = vmax.f32 %v444, 0.0
        %v481 = vmax.f32 %v447, 0.0
        %v482 = vmax.f32 %v449, 0.0
        %483 = vst [vmem:[%s164] sm:$0xff] %v451
        %484 = vst [vmem:[%s164 + $0x8] sm:$0xff] %v452
        %485 = vst [vmem:[%s164 + $0x10] sm:$0xff] %v453
        %486 = vst [vmem:[%s164 + $0x18] sm:$0xff] %v454
        %487 = vst [vmem:[%s164 + $0x20] sm:$0xff] %v455
        %488 = vst [vmem:[%s164 + $0x28] sm:$0xff] %v456
        %489 = vst [vmem:[%s164 + $0x30] sm:$0xff] %v457
        %490 = vst [vmem:[%s164 + $0x38] sm:$0xff] %v458
        %491 = vst [vmem:[%s164 + $0x40] sm:$0xff] %v459
        %492 = vst [vmem:[%s164 + $0x48] sm:$0xff] %v460
        %493 = vst [vmem:[%s164 + $0x50] sm:$0xff] %v461
        %494 = vst [vmem:[%s164 + $0x58] sm:$0xff] %v462
        %495 = vst [vmem:[%s164 + $0x60] sm:$0xff] %v463
        %496 = vst [vmem:[%s164 + $0x68] sm:$0xff] %v464
        %497 = vst [vmem:[%s164 + $0x70] sm:$0xff] %v465
        %498 = vst [vmem:[%s164 + $0x78] sm:$0xff] %v466
        %499 = vst [vmem:[%s164 + $0x80] sm:$0xff] %v467
        %500 = vst [vmem:[%s164 + $0x88] sm:$0xff] %v468
        %501 = vst [vmem:[%s164 + $0x90] sm:$0xff] %v469
        %502 = vst [vmem:[%s164 + $0x98] sm:$0xff] %v470
        %503 = vst [vmem:[%s164 + $0xa0] sm:$0xff] %v471
        %504 = vst [vmem:[%s164 + $0xa8] sm:$0xff] %v472
        %505 = vst [vmem:[%s164 + $0xb0] sm:$0xff] %v473
        %506 = vst [vmem:[%s164 + $0xb8] sm:$0xff] %v474
        %507 = vst [vmem:[%s164 + $0xc0] sm:$0xff] %v475
        %508 = vst [vmem:[%s164 + $0xc8] sm:$0xff] %v476
        %509 = vst [vmem:[%s164 + $0xd0] sm:$0xff] %v477
        %510 = vst [vmem:[%s164 + $0xd8] sm:$0xff] %v478
        %511 = vst [vmem:[%s164 + $0xe0] sm:$0xff] %v479
        %512 = vst [vmem:[%s164 + $0xe8] sm:$0xff] %v480
        %513 = vst [vmem:[%s164 + $0xf0] sm:$0xff] %v481
        %514 = vst [vmem:[%s164 + $0xf8] sm:$0xff] %v482
        %s515 = sand.u32 %s93, 1
        %s516 = scalar_lea.sflag [#allocation3], %s515
        %s517 = sand.u32 %s93, 1
        %s518 = smul.addr %s517, 256
        %s519 = scalar_lea.vmem [#allocation2], %s518
        // Predicated region
        $region33: #{tpu_custom_call.1} parent=31 // pred_check
          %p520 = pneg %p103
        $region34: #{tpu_custom_call.1} parent=31 // pred_check_branch
          %522 = sbr.rel (%p520) target = $region36
        $region35: #{tpu_custom_call.1} parent=31 // pred_region
          %s523 = smul.u32 32, %s17
          %525 = vsyncadd %s516, 0
          %s526 = smul.addr %s523, 8
          %s527 = scalar_lea.hbm %s3, %s526
          %s528 = sshll.u32 %s519, 4
          %s529 = int_to_ptr.vmem [resolvable:$true] %s528
          %s530 = sshll.u32 %s527, 4
          %s531 = int_to_ptr.hbm [resolvable:$true] %s530
          %536 = dma.vmem_to_hbm [thread:$0]  %s529, 4096, %s531, %s516, 128, 128, 8
        $region36: #{tpu_custom_call.1} parent=31 // pred_fallthru
          _
      $region32: #{tpu_custom_call.1} parent=5 // pred_fallthru
        _
      %p537 = scmp.le.s32.totalorder 2, %s12
      // Predicated region
      $region37: #{tpu_custom_call.1} parent=5 // pred_check
        %p538 = pneg %p537
      $region38: #{tpu_custom_call.1} parent=5 // pred_check_branch
        %540 = sbr.rel (%p538) target = $region40
      $region39: #{tpu_custom_call.1} parent=5 // pred_region
        %s541 = ssub.s32 %s12, 2
        // Predicated region
        $region41: #{tpu_custom_call.1} parent=39 // pred_check
          %p542 = pneg %p109
        $region42: #{tpu_custom_call.1} parent=39 // pred_check_branch
          %544 = sbr.rel (%p542) target = $region44
        $region43: #{tpu_custom_call.1} parent=39 // pred_region
          %s545 = sand.u32 %s94, 1
          %s546 = scalar_lea.sflag [#allocation3], %s545
          %s547 = sand.u32 %s94, 1
          %s548 = smul.addr %s547, 256
          %s549 = scalar_lea.vmem [#allocation2], %s548
          %551 = dma.done %s546, 4096
        $region44: #{tpu_custom_call.1} parent=39 // pred_fallthru
          _
      $region40: #{tpu_custom_call.1} parent=5 // pred_fallthru
        _
    $region6: #{tpu_custom_call.1} parent=1 // loop_footer
      %s16 = sadd.s32 1, %s12
    $region7: #{tpu_custom_call.1} parent=1 // loop_footer_branch
      %11 = sbr.rel target = $region3
    $region8: #{tpu_custom_call.1} parent=1 // loop_exit
      _
    %552 = vsyncpa [#allocation3], 1
    %s553 = scalar_lea.sflag [#allocation3], 1
    %554 = vsyncpa %s553, 1

// kernel: tpu_custom_call.1
$region0: #{tpu_custom_call.1}
  #allocation0 [shape = 'u32[]', space=smem, size = 0x4, offset = 0x4, fixed_abs, tag = 'smem constant byte address 0x4 - core index']
  #allocation1 [shape = 'u32[72,128]{1,0:T(1,128)}', space=vmem, size = 0x9000, scoped, tag = 'internal scratch']
  %s0 = inlined_call_operand.vmem [shape: bf16[512,48], index: 0, kind: input, shape index: {}]
  %s1 = inlined_call_operand.vmem [shape: bf16[48,128], index: 1, kind: input, shape index: {}]
  %s2 = inlined_call_operand.vmem [shape: f32[1,128], index: 2, kind: input, shape index: {}]
  %s3 = inlined_call_operand.hbm [shape: f32[512,128], index: 3, kind: output, shape index: {}]
  %s4 = sld [smem:[#allocation0]]
  $region45: #{tpu_custom_call.1} parent=0
    _
  %s6 = ssub.s32 1, %s4
  %s7 = scalar_select 0, %s6, %s4
  $region1: #{tpu_custom_call.1} parent=0
    #allocation2 [shape = 'u8[262144]{0}', space=vmem, size = 0x40000, scoped, tag = 'output window, operand 0']
    #allocation3 [shape = 's32[2]{0}', space=sflag, size = 0x8, scoped, tag = 'scoped memory for tpu_custom_call.1']
    %8 = vsyncpa [#allocation3], 0
    %s9 = scalar_lea.sflag [#allocation3], 1
    %10 = vsyncpa %s9, 0
    loop: start=0, step=1, limit=4
    $region2: #{tpu_custom_call.1} parent=1 // loop_pre_header
      _
    $region3: #{tpu_custom_call.1} parent=1 // loop_header
      %s12 = sphi 0, %s16
      %p13 = scmp.ge.s32.totalorder %s12, 4
      %s22 = sphi 0, %s24
      %s25 = sphi 0, %s22
      %s26 = sphi 0, %s25
      %s42 = sphi 0, %s26
      %s46 = sphi 0, %s46
      %s48 = sphi 0, %s46
      %s49 = sphi 0, %s48
      %s63 = sphi 0, %s49
      %s67 = sphi 0, %s67
      %s69 = sphi 0, %s67
      %s70 = sphi 0, %s69
      %s84 = sphi 0, %s70
      %s90 = sphi 0, %s92
      %s93 = sphi 0, %s90
      %s94 = sphi 0, %s93
      %s110 = sphi 0, %s94
    $region4: #{tpu_custom_call.1} parent=1 // loop_header_branch
      %15 = sbr.rel (%p13) target = $region8
    $region5: #{tpu_custom_call.1} parent=1 // loop_body
      %s17 = ssub.s32 %s12, 1
      %s18 = ssub.s32 %s12, 2
      %s19 = sadd.s32 %s12, 1
      %s20 = ssub.s32 %s12, %s19
      %p21 = scmp.eq.s32.totalorder %s20, 0
      %s23 = sadd.s32 %s22, 1
      %s24 = scalar_select %p21, %s22, %s23
      %p27 = pneg %p21
      %p28 = scmp.eq.s32.totalorder %s12, 1
      %p29 = por %p27, %p28
      %p30 = scmp.ne.s32.totalorder %s22, %s25
      %p31 = scmp.eq.s32.totalorder %s12, 0
      %p32 = por %p30, %p31
      %p33 = scmp.ne.s32.totalorder %s22, %s25
      %p34 = scmp.eq.s32.totalorder %s17, 1
      %p35 = por %p33, %p34
      %p36 = scmp.ne.s32.totalorder %s25, %s26
      %p37 = scmp.eq.s32.totalorder %s17, 0
      %p38 = por %p36, %p37
      %p39 = scmp.ne.s32.totalorder %s25, %s26
      %p40 = scmp.eq.s32.totalorder %s18, 1
      %p41 = por %p39, %p40
      %p43 = scmp.ne.s32.totalorder %s26, %s42
      %p44 = scmp.eq.s32.totalorder %s18, 0
      %p45 = por %p43, %p44
      %s47 = sadd.s32 %s46, 1
      %p50 = scmp.eq.s32.totalorder %s12, 1
      %p51 = scmp.ne.s32.totalorder %s46, %s48
      %p52 = scmp.eq.s32.totalorder %s12, 0
      %p53 = por %p51, %p52
      %p54 = scmp.ne.s32.totalorder %s46, %s48
      %p55 = scmp.eq.s32.totalorder %s17, 1
      %p56 = por %p54, %p55
      %p57 = scmp.ne.s32.totalorder %s48, %s49
      %p58 = scmp.eq.s32.totalorder %s17, 0
      %p59 = por %p57, %p58
      %p60 = scmp.ne.s32.totalorder %s48, %s49
      %p61 = scmp.eq.s32.totalorder %s18, 1
      %p62 = por %p60, %p61
      %p64 = scmp.ne.s32.totalorder %s49, %s63
      %p65 = scmp.eq.s32.totalorder %s18, 0
      %p66 = por %p64, %p65
      %s68 = sadd.s32 %s67, 1
      %p71 = scmp.eq.s32.totalorder %s12, 1
      %p72 = scmp.ne.s32.totalorder %s67, %s69
      %p73 = scmp.eq.s32.totalorder %s12, 0
      %p74 = por %p72, %p73
      %p75 = scmp.ne.s32.totalorder %s67, %s69
      %p76 = scmp.eq.s32.totalorder %s17, 1
      %p77 = por %p75, %p76
      %p78 = scmp.ne.s32.totalorder %s69, %s70
      %p79 = scmp.eq.s32.totalorder %s17, 0
      %p80 = por %p78, %p79
      %p81 = scmp.ne.s32.totalorder %s69, %s70
      %p82 = scmp.eq.s32.totalorder %s18, 1
      %p83 = por %p81, %p82
      %p85 = scmp.ne.s32.totalorder %s70, %s84
      %p86 = scmp.eq.s32.totalorder %s18, 0
      %p87 = por %p85, %p86
      %s88 = ssub.s32 %s12, %s19
      %p89 = scmp.eq.s32.totalorder %s88, 0
      %s91 = sadd.s32 %s90, 1
      %s92 = scalar_select %p89, %s90, %s91
      %p95 = pneg %p89
      %p96 = scmp.eq.s32.totalorder %s12, 1
      %p97 = por %p95, %p96
      %p98 = scmp.ne.s32.totalorder %s90, %s93
      %p99 = scmp.eq.s32.totalorder %s12, 0
      %p100 = por %p98, %p99
      %p101 = scmp.ne.s32.totalorder %s90, %s93
      %p102 = scmp.eq.s32.totalorder %s17, 1
      %p103 = por %p101, %p102
      %p104 = scmp.ne.s32.totalorder %s93, %s94
      %p105 = scmp.eq.s32.totalorder %s17, 0
      %p106 = por %p104, %p105
      %p107 = scmp.ne.s32.totalorder %s93, %s94
      %p108 = scmp.eq.s32.totalorder %s18, 1
      %p109 = por %p107, %p108
      %p111 = scmp.ne.s32.totalorder %s94, %s110
      %p112 = scmp.eq.s32.totalorder %s18, 0
      %p113 = por %p111, %p112
      %p114 = scmp.le.s32.totalorder 1, %s12
      %p115 = scmp.lt.s32.totalorder %s12, 3
      %p116 = pnand %p114, %p115
      %p117 = pneg %p116
      // Predicated region
      $region9: #{tpu_custom_call.1} parent=5 // pred_check
        _
      $region10: #{tpu_custom_call.1} parent=5 // pred_check_branch
        %119 = sbr.rel (%p116) target = $region12
      $region11: #{tpu_custom_call.1} parent=5 // pred_region
        %s120 = ssub.s32 %s12, 1
        // Predicated region
        $region13: #{tpu_custom_call.1} parent=11 // pred_check
          %p121 = pneg %p59
        $region14: #{tpu_custom_call.1} parent=11 // pred_check_branch
          %123 = sbr.rel (%p121) target = $region16
        $region15: #{tpu_custom_call.1} parent=11 // pred_region
          _
        $region16: #{tpu_custom_call.1} parent=11 // pred_fallthru
          _
        // Predicated region
        $region17: #{tpu_custom_call.1} parent=11 // pred_check
          %p124 = pneg %p80
        $region18: #{tpu_custom_call.1} parent=11 // pred_check_branch
          %126 = sbr.rel (%p124) target = $region20
        $region19: #{tpu_custom_call.1} parent=11 // pred_region
          _
        $region20: #{tpu_custom_call.1} parent=11 // pred_fallthru
          _
      $region12: #{tpu_custom_call.1} parent=5 // pred_fallthru
        _
      %p127 = scmp.lt.s32.totalorder %s12, 2
      // Predicated region
      $region21: #{tpu_custom_call.1} parent=5 // pred_check
        %p128 = pneg %p127
      $region22: #{tpu_custom_call.1} parent=5 // pred_check_branch
        %130 = sbr.rel (%p128) target = $region24
      $region23: #{tpu_custom_call.1} parent=5 // pred_region
        // Predicated region
        $region25: #{tpu_custom_call.1} parent=23 // pred_check
          %p131 = pneg %p32
        $region26: #{tpu_custom_call.1} parent=23 // pred_check_branch
          %133 = sbr.rel (%p131) target = $region28
        $region27: #{tpu_custom_call.1} parent=23 // pred_region
          %s134 = smul.u32 32, %s12
          %p135 = scmp.lt.s32.totalorder %s134, 63
          %s136 = scalar_select %p135, %s134, 63
          %s137 = smul.addr %s136, 4
          %s138 = scalar_lea.vmem %s0, %s137
          %s139 = smul.u32 32, %s12
        $region28: #{tpu_custom_call.1} parent=23 // pred_fallthru
          _
      $region24: #{tpu_custom_call.1} parent=5 // pred_fallthru
        _
      %p140 = scmp.le.s32.totalorder 1, %s12
      %p141 = scmp.lt.s32.totalorder %s12, 3
      %p142 = pnand %p140, %p141
      %p143 = pneg %p142
      // Predicated region
      $region29: #{tpu_custom_call.1} parent=5 // pred_check
        _
      $region30: #{tpu_custom_call.1} parent=5 // pred_check_branch
        %145 = sbr.rel (%p142) target = $region32
      $region31: #{tpu_custom_call.1} parent=5 // pred_region
        %s146 = ssub.s32 %s12, 1
        %s147 = smul.u32 32, %s17
        %p148 = scmp.lt.s32.totalorder %s147, 63
        %s149 = scalar_select %p148, %s147, 63
        %s150 = smul.addr %s149, 4
        %s151 = scalar_lea.vmem %s0, %s150
        %p152 = pneg %p38
        %p153 = pneg %p35
        %p154 = pneg %p59
        %p155 = pneg %p56
        %p156 = pneg %p80
        %p157 = pneg %p77
        %p158 = pneg %p106
        %p159 = pneg %p103
        %s160 = sand.u32 %s93, 1
        %s161 = scalar_lea.sflag [#allocation3], %s160
        %s162 = sand.u32 %s93, 1
        %s163 = smul.addr %s162, 256
        %s164 = scalar_lea.vmem [#allocation2], %s163
        %s165 = smul.u32 32, %s17
        %p166 = scmp.lt.s32.totalorder %s165, 63
        %s167 = scalar_select %p166, %s165, 63
        %s168 = smul.addr %s167, 4
        %s169 = scalar_lea.vmem %s0, %s168
        %s170 = smul.u32 32, %s17
        %s171 = smul.u32 32, %s17
        %v173 = vld [vmem:[%s169] sm:$0xf]
        %v174 = vld [vmem:[%s169 + $0x4] sm:$0xf]
        %v175 = vld [vmem:[%s169 + $0x8] sm:$0xf]
        %v176 = vld [vmem:[%s169 + $0xc] sm:$0xf]
        %v177 = vld [vmem:[%s169 + $0x10] sm:$0xf]
        %v178 = vld [vmem:[%s169 + $0x14] sm:$0xf]
        %v179 = vld [vmem:[%s169 + $0x18] sm:$0xf]
        %v180 = vld [vmem:[%s169 + $0x1c] sm:$0xf]
        %v181 = vld [vmem:[%s169 + $0x20] sm:$0xf]
        %v182 = vld [vmem:[%s169 + $0x24] sm:$0xf]
        %v183 = vld [vmem:[%s169 + $0x28] sm:$0xf]
        %v184 = vld [vmem:[%s169 + $0x2c] sm:$0xf]
        %v185 = vld [vmem:[%s169 + $0x30] sm:$0xf]
        %v186 = vld [vmem:[%s169 + $0x34] sm:$0xf]
        %v187 = vld [vmem:[%s169 + $0x38] sm:$0xf]
        %v188 = vld [vmem:[%s169 + $0x3c] sm:$0xf]
        %v189 = vld [vmem:[%s169 + $0x40] sm:$0xf]
        %v190 = vld [vmem:[%s169 + $0x44] sm:$0xf]
        %v191 = vld [vmem:[%s169 + $0x48] sm:$0xf]
        %v192 = vld [vmem:[%s169 + $0x4c] sm:$0xf]
        %v193 = vld [vmem:[%s169 + $0x50] sm:$0xf]
        %v194 = vld [vmem:[%s169 + $0x54] sm:$0xf]
        %v195 = vld [vmem:[%s169 + $0x58] sm:$0xf]
        %v196 = vld [vmem:[%s169 + $0x5c] sm:$0xf]
        %v197 = vld [vmem:[%s169 + $0x60] sm:$0xf]
        %v198 = vld [vmem:[%s169 + $0x64] sm:$0xf]
        %v199 = vld [vmem:[%s169 + $0x68] sm:$0xf]
        %v200 = vld [vmem:[%s169 + $0x6c] sm:$0xf]
        %v201 = vld [vmem:[%s169 + $0x70] sm:$0xf]
        %v202 = vld [vmem:[%s169 + $0x74] sm:$0xf]
        %v203 = vld [vmem:[%s169 + $0x78] sm:$0xf]
        %v204 = vld [vmem:[%s169 + $0x7c] sm:$0xf]
        %v205 = vld [vmem:[%s1] sm:$0xf]
        %v206 = vld [vmem:[%s1 + $0x4] sm:$0xf]
        %v207 = vld [vmem:[%s1 + $0x8] sm:$0xf]
        %v208 = vld [vmem:[%s1 + $0xc] sm:$0xf]
        %v209 = vld [vmem:[%s1 + $0x10] sm:$0xf]
        %v210 = vld [vmem:[%s1 + $0x14] sm:$0xf]
        %v211 = vld [vmem:[%s2] sm:$0x1]
        %v213 = vperm.slane %v211, 0
        %v247 = vunpack.c.l.b16 %v173
        %v248 = vunpack.c.l.b16 %v174
        %v249 = vunpack.c.l.b16 %v175
        %v250 = vunpack.c.l.b16 %v176
        %v251 = vunpack.c.l.b16 %v177
        %v252 = vunpack.c.l.b16 %v178
        %v253 = vunpack.c.l.b16 %v179
        %v254 = vunpack.c.l.b16 %v180
        %v255 = vunpack.c.l.b16 %v181
        %v256 = vunpack.c.l.b16 %v182
        %v257 = vunpack.c.l.b16 %v183
        %v258 = vunpack.c.l.b16 %v184
        %v259 = vunpack.c.l.b16 %v185
        %v260 = vunpack.c.l.b16 %v186
        %v261 = vunpack.c.l.b16 %v187
        %v262 = vunpack.c.l.b16 %v188
        %v263 = vunpack.c.l.b16 %v189
        %v264 = vunpack.c.l.b16 %v190
        %v265 = vunpack.c.l.b16 %v191
        %v266 = vunpack.c.l.b16 %v192
        %v267 = vunpack.c.l.b16 %v193
        %v268 = vunpack.c.l.b16 %v194
        %v269 = vunpack.c.l.b16 %v195
        %v270 = vunpack.c.l.b16 %v196
        %v271 = vunpack.c.l.b16 %v197
        %v272 = vunpack.c.l.b16 %v198
        %v273 = vunpack.c.l.b16 %v199
        %v274 = vunpack.c.l.b16 %v200
        %v275 = vunpack.c.l.b16 %v201
        %v276 = vunpack.c.l.b16 %v202
        %v277 = vunpack.c.l.b16 %v203
        %v278 = vunpack.c.l.b16 %v204
        %v279 = vpack.c.b16 %v248, %v247
        %v280 = vpack.c.b16 %v250, %v249
        %v281 = vpack.c.b16 %v252, %v251
        %v282 = vpack.c.b16 %v254, %v253
        %v283 = vpack.c.b16 %v256, %v255
        %v284 = vpack.c.b16 %v258, %v257
        %v285 = vpack.c.b16 %v260, %v259
        %v286 = vpack.c.b16 %v262, %v261
        %v287 = vpack.c.b16 %v264, %v263
        %v288 = vpack.c.b16 %v266, %v265
        %v289 = vpack.c.b16 %v268, %v267
        %v290 = vpack.c.b16 %v270, %v269
        %v291 = vpack.c.b16 %v272, %v271
        %v292 = vpack.c.b16 %v274, %v273
        %v293 = vpack.c.b16 %v276, %v275
        %v294 = vpack.c.b16 %v278, %v277
        %v301 = vunpack.c.l.b16 %v205
        %v302 = vunpack.c.l.b16 %v206
        %v303 = vunpack.c.l.b16 %v207
        %v304 = vunpack.c.l.b16 %v208
        %v305 = vunpack.c.l.b16 %v209
        %v306 = vunpack.c.l.b16 %v210
        %v307 = vpack.c.b16 %v302, %v301
        %v308 = vpack.c.b16 %v304, %v303
        %v309 = vpack.c.b16 %v306, %v305
        %vm313 = vcmask 392192
        %v315 = vsel %vm313, %v279, 0
        %v318 = vsel %vm313, %v280, 0
        %v321 = vsel %vm313, %v281, 0
        %v324 = vsel %vm313, %v282, 0
        %v327 = vsel %vm313, %v283, 0
        %v330 = vsel %vm313, %v284, 0
        %v333 = vsel %vm313, %v285, 0
        %v336 = vsel %vm313, %v286, 0
        %v339 = vsel %vm313, %v287, 0
        %v342 = vsel %vm313, %v288, 0
        %v345 = vsel %vm313, %v289, 0
        %v348 = vsel %vm313, %v290, 0
        %v351 = vsel %vm313, %v291, 0
        %v354 = vsel %vm313, %v292, 0
        %v357 = vsel %vm313, %v293, 0
        %v360 = vsel %vm313, %v294, 0
        %362 = vmatpush.bf16.msra.mxu0 0
        %363 = vmatpush.bf16.msra.mxu0 0
        %364 = vmatpush.bf16.msra.mxu0 0
        %365 = vmatpush.bf16.msra.mxu0 0
        %366 = vmatpush.bf16.msra.mxu0 0
        %367 = vmatpush.bf16.msra.mxu0 %v309
        %368 = vmatpush.bf16.msra.mxu0 %v308
        %369 = vmatpush.bf16.msra.mxu0 %v307
        %370 = vmatmul.bf16.gmra.mxu0 %v315
        %v371 = vpop.f32.mrf.mxu0
        %v372 = vadd.f32 %v213, %v371
        %v373 = vpop.f32.mrf.mxu0
        %v374 = vadd.f32 %v213, %v373
        %375 = vmatmul.bf16.gmra.mxu0 %v318
        %v376 = vpop.f32.mrf.mxu0
        %v377 = vadd.f32 %v213, %v376
        %v378 = vpop.f32.mrf.mxu0
        %v379 = vadd.f32 %v213, %v378
        %380 = vmatmul.bf16.gmra.mxu0 %v321
        %v381 = vpop.f32.mrf.mxu0
        %v382 = vadd.f32 %v213, %v381
        %v383 = vpop.f32.mrf.mxu0
        %v384 = vadd.f32 %v213, %v383
        %385 = vmatmul.bf16.gmra.mxu0 %v324
        %v386 = vpop.f32.mrf.mxu0
        %v387 = vadd.f32 %v213, %v386
        %v388 = vpop.f32.mrf.mxu0
        %v389 = vadd.f32 %v213, %v388
        %390 = vmatmul.bf16.gmra.mxu0 %v327
        %v391 = vpop.f32.mrf.mxu0
        %v392 = vadd.f32 %v213, %v391
        %v393 = vpop.f32.mrf.mxu0
        %v394 = vadd.f32 %v213, %v393
        %395 = vmatmul.bf16.gmra.mxu0 %v330
        %v396 = vpop.f32.mrf.mxu0
        %v397 = vadd.f32 %v213, %v396
        %v398 = vpop.f32.mrf.mxu0
        %v399 = vadd.f32 %v213, %v398
        %400 = vmatmul.bf16.gmra.mxu0 %v333
        %v401 = vpop.f32.mrf.mxu0
        %v402 = vadd.f32 %v213, %v401
        %v403 = vpop.f32.mrf.mxu0
        %v404 = vadd.f32 %v213, %v403
        %405 = vmatmul.bf16.gmra.mxu0 %v336
        %v406 = vpop.f32.mrf.mxu0
        %v407 = vadd.f32 %v213, %v406
        %v408 = vpop.f32.mrf.mxu0
        %v409 = vadd.f32 %v213, %v408
        %410 = vmatmul.bf16.gmra.mxu0 %v339
        %v411 = vpop.f32.mrf.mxu0
        %v412 = vadd.f32 %v213, %v411
        %v413 = vpop.f32.mrf.mxu0
        %v414 = vadd.f32 %v213, %v413
        %415 = vmatmul.bf16.gmra.mxu0 %v342
        %v416 = vpop.f32.mrf.mxu0
        %v417 = vadd.f32 %v213, %v416
        %v418 = vpop.f32.mrf.mxu0
        %v419 = vadd.f32 %v213, %v418
        %420 = vmatmul.bf16.gmra.mxu0 %v345
        %v421 = vpop.f32.mrf.mxu0
        %v422 = vadd.f32 %v213, %v421
        %v423 = vpop.f32.mrf.mxu0
        %v424 = vadd.f32 %v213, %v423
        %425 = vmatmul.bf16.gmra.mxu0 %v348
        %v426 = vpop.f32.mrf.mxu0
        %v427 = vadd.f32 %v213, %v426
        %v428 = vpop.f32.mrf.mxu0
        %v429 = vadd.f32 %v213, %v428
        %430 = vmatmul.bf16.gmra.mxu0 %v351
        %v431 = vpop.f32.mrf.mxu0
        %v432 = vadd.f32 %v213, %v431
        %v433 = vpop.f32.mrf.mxu0
        %v434 = vadd.f32 %v213, %v433
        %435 = vmatmul.bf16.gmra.mxu0 %v354
        %v436 = vpop.f32.mrf.mxu0
        %v437 = vadd.f32 %v213, %v436
        %v438 = vpop.f32.mrf.mxu0
        %v439 = vadd.f32 %v213, %v438
        %440 = vmatmul.bf16.gmra.mxu0 %v357
        %v441 = vpop.f32.mrf.mxu0
        %v442 = vadd.f32 %v213, %v441
        %v443 = vpop.f32.mrf.mxu0
        %v444 = vadd.f32 %v213, %v443
        %445 = vmatmul.bf16.gmra.mxu0 %v360
        %v446 = vpop.f32.mrf.mxu0
        %v447 = vadd.f32 %v213, %v446
        %v448 = vpop.f32.mrf.mxu0
        %v449 = vadd.f32 %v213, %v448
        %450 = vdwg.mxu0
        %v451 = vmax.f32 %v372, 0.0
        %v452 = vmax.f32 %v374, 0.0
        %v453 = vmax.f32 %v377, 0.0
        %v454 = vmax.f32 %v379, 0.0
        %v455 = vmax.f32 %v382, 0.0
        %v456 = vmax.f32 %v384, 0.0
        %v457 = vmax.f32 %v387, 0.0
        %v458 = vmax.f32 %v389, 0.0
        %v459 = vmax.f32 %v392, 0.0
        %v460 = vmax.f32 %v394, 0.0
        %v461 = vmax.f32 %v397, 0.0
        %v462 = vmax.f32 %v399, 0.0
        %v463 = vmax.f32 %v402, 0.0
        %v464 = vmax.f32 %v404, 0.0
        %v465 = vmax.f32 %v407, 0.0
        %v466 = vmax.f32 %v409, 0.0
        %v467 = vmax.f32 %v412, 0.0
        %v468 = vmax.f32 %v414, 0.0
        %v469 = vmax.f32 %v417, 0.0
        %v470 = vmax.f32 %v419, 0.0
        %v471 = vmax.f32 %v422, 0.0
        %v472 = vmax.f32 %v424, 0.0
        %v473 = vmax.f32 %v427, 0.0
        %v474 = vmax.f32 %v429, 0.0
        %v475 = vmax.f32 %v432, 0.0
        %v476 = vmax.f32 %v434, 0.0
        %v477 = vmax.f32 %v437, 0.0
        %v478 = vmax.f32 %v439, 0.0
        %v479 = vmax.f32 %v442, 0.0
        %v480 = vmax.f32 %v444, 0.0
        %v481 = vmax.f32 %v447, 0.0
        %v482 = vmax.f32 %v449, 0.0
        %483 = vst [vmem:[%s164] sm:$0xff] %v451
        %484 = vst [vmem:[%s164 + $0x8] sm:$0xff] %v452
        %485 = vst [vmem:[%s164 + $0x10] sm:$0xff] %v453
        %486 = vst [vmem:[%s164 + $0x18] sm:$0xff] %v454
        %487 = vst [vmem:[%s164 + $0x20] sm:$0xff] %v455
        %488 = vst [vmem:[%s164 + $0x28] sm:$0xff] %v456
        %489 = vst [vmem:[%s164 + $0x30] sm:$0xff] %v457
        %490 = vst [vmem:[%s164 + $0x38] sm:$0xff] %v458
        %491 = vst [vmem:[%s164 + $0x40] sm:$0xff] %v459
        %492 = vst [vmem:[%s164 + $0x48] sm:$0xff] %v460
        %493 = vst [vmem:[%s164 + $0x50] sm:$0xff] %v461
        %494 = vst [vmem:[%s164 + $0x58] sm:$0xff] %v462
        %495 = vst [vmem:[%s164 + $0x60] sm:$0xff] %v463
        %496 = vst [vmem:[%s164 + $0x68] sm:$0xff] %v464
        %497 = vst [vmem:[%s164 + $0x70] sm:$0xff] %v465
        %498 = vst [vmem:[%s164 + $0x78] sm:$0xff] %v466
        %499 = vst [vmem:[%s164 + $0x80] sm:$0xff] %v467
        %500 = vst [vmem:[%s164 + $0x88] sm:$0xff] %v468
        %501 = vst [vmem:[%s164 + $0x90] sm:$0xff] %v469
        %502 = vst [vmem:[%s164 + $0x98] sm:$0xff] %v470
        %503 = vst [vmem:[%s164 + $0xa0] sm:$0xff] %v471
        %504 = vst [vmem:[%s164 + $0xa8] sm:$0xff] %v472
        %505 = vst [vmem:[%s164 + $0xb0] sm:$0xff] %v473
        %506 = vst [vmem:[%s164 + $0xb8] sm:$0xff] %v474
        %507 = vst [vmem:[%s164 + $0xc0] sm:$0xff] %v475
        %508 = vst [vmem:[%s164 + $0xc8] sm:$0xff] %v476
        %509 = vst [vmem:[%s164 + $0xd0] sm:$0xff] %v477
        %510 = vst [vmem:[%s164 + $0xd8] sm:$0xff] %v478
        %511 = vst [vmem:[%s164 + $0xe0] sm:$0xff] %v479
        %512 = vst [vmem:[%s164 + $0xe8] sm:$0xff] %v480
        %513 = vst [vmem:[%s164 + $0xf0] sm:$0xff] %v481
        %514 = vst [vmem:[%s164 + $0xf8] sm:$0xff] %v482
        %s515 = sand.u32 %s93, 1
        %s516 = scalar_lea.sflag [#allocation3], %s515
        %s517 = sand.u32 %s93, 1
        %s518 = smul.addr %s517, 256
        %s519 = scalar_lea.vmem [#allocation2], %s518
        // Predicated region
        $region33: #{tpu_custom_call.1} parent=31 // pred_check
          %p520 = pneg %p103
        $region34: #{tpu_custom_call.1} parent=31 // pred_check_branch
          %522 = sbr.rel (%p520) target = $region36
        $region35: #{tpu_custom_call.1} parent=31 // pred_region
          %s523 = smul.u32 32, %s17
          %525 = vsyncadd %s516, 0
          %s526 = smul.addr %s523, 8
          %s527 = scalar_lea.hbm %s3, %s526
          %s528 = sshll.u32 %s519, 4
          %s529 = int_to_ptr.vmem [resolvable:$true] %s528
          %s530 = sshll.u32 %s527, 4
          %s531 = int_to_ptr.hbm [resolvable:$true] %s530
          %536 = dma.vmem_to_hbm [thread:$0]  %s529, 4096, %s531, %s516, 128, 128, 8
        $region36: #{tpu_custom_call.1} parent=31 // pred_fallthru
          _
      $region32: #{tpu_custom_call.1} parent=5 // pred_fallthru
        _
      %p537 = scmp.le.s32.totalorder 2, %s12
      // Predicated region
      $region37: #{tpu_custom_call.1} parent=5 // pred_check
        %p538 = pneg %p537
      $region38: #{tpu_custom_call.1} parent=5 // pred_check_branch
        %540 = sbr.rel (%p538) target = $region40
      $region39: #{tpu_custom_call.1} parent=5 // pred_region
        %s541 = ssub.s32 %s12, 2
        // Predicated region
        $region41: #{tpu_custom_call.1} parent=39 // pred_check
          %p542 = pneg %p109
        $region42: #{tpu_custom_call.1} parent=39 // pred_check_branch
          %544 = sbr.rel (%p542) target = $region44
        $region43: #{tpu_custom_call.1} parent=39 // pred_region
          %s545 = sand.u32 %s94, 1
          %s546 = scalar_lea.sflag [#allocation3], %s545
          %s547 = sand.u32 %s94, 1
          %s548 = smul.addr %s547, 256
          %s549 = scalar_lea.vmem [#allocation2], %s548
          %551 = dma.done %s546, 4096
        $region44: #{tpu_custom_call.1} parent=39 // pred_fallthru
          _
      $region40: #{tpu_custom_call.1} parent=5 // pred_fallthru
        _
    $region6: #{tpu_custom_call.1} parent=1 // loop_footer
      %s16 = sadd.s32 1, %s12
    $region7: #{tpu_custom_call.1} parent=1 // loop_footer_branch
      %11 = sbr.rel target = $region3
    $region8: #{tpu_custom_call.1} parent=1 // loop_exit
      _
    %552 = vsyncpa [#allocation3], 1
    %s553 = scalar_lea.sflag [#allocation3], 1
    %554 = vsyncpa %s553, 1

</llo_original>
